<compile_context>
chip_gen: v5e
topology: v5e:2x2
jax: 0.10.0
libtpu: 0.0.40
codegen_flags: <defaults>
</compile_context>

<pallas_src>
import functools

import jax
import jax.numpy as jnp
from jax.experimental import pallas as pl
from jax.experimental.pallas import tpu as pltpu


# ---------------------------------------------------------------------------
# Kernel
# ---------------------------------------------------------------------------
_NATIVE_COMPUTE_DTYPES = (
    jnp.dtype(jnp.float32),
    jnp.dtype(jnp.bfloat16),
    jnp.dtype(jnp.float16),
)


def _hswish_kernel(x_ref, o_ref):
    # NOTE: for a partial last row-block, rows past the array end contain stale
    # VMEM; we compute garbage there but it is never written back (Pallas masks
    # the output DMA).  Do not add anything here (reductions, NaN checks, ...)
    # that assumes the whole block holds valid data.
    x = x_ref[...]
    # f32/bf16/f16 compute natively (bf16 VPU on v6e/v7x).  Anything else
    # (ints, fp8, ...) is upcast to f32: the extra VPU casts stay hidden under
    # the HBM DMA, while integer arithmetic would truncate 1/6 -> 0.
    cdt = x.dtype if jnp.dtype(x.dtype) in _NATIVE_COMPUTE_DTYPES else jnp.float32
    xc = x.astype(cdt)
    gated = jnp.clip(xc + 3.0, 0.0, 6.0)          # ReLU6(x + 3)
    o_ref[...] = (xc * gated * (1.0 / 6.0)).astype(o_ref.dtype)


# ---------------------------------------------------------------------------
# Device capabilities (generation-aware tiling parameters)
# ---------------------------------------------------------------------------
_LANES = 128
_SUBLANE_PACK = {4: 8, 2: 16, 1: 32}              # itemsize -> native sublane packing


def _round_up(a: int, b: int) -> int:
    return (a + b - 1) // b * b


@functools.lru_cache(maxsize=1)
def _device_caps():
    vmem_cap = None
    try:
        vmem_cap = int(pltpu.get_tpu_info().vmem_capacity_bytes)
    except Exception:
        pass
    try:
        kind = jax.devices()[0].device_kind.lower()
    except Exception:
        kind = ""

    is_v7 = "7" in kind                            # e.g. "TPU7x" / "TPU v7x"
    # v7x has 2 TensorCores per chip; v4/v5p megacore also shards a "parallel"
    # grid axis across two cores.
    dual_tc = is_v7 or ("v4" in kind) or ("v5p" in kind)
    small_vmem = is_v7 or (vmem_cap is not None and vmem_cap <= (64 << 20) + (1 << 20))

    if small_vmem:
        # v7x: 64 MiB VMEM/TC -> 2 bufs x (in+out) x 8 MiB = 32 MiB + headroom.
        max_block, vmem_limit = 8 << 20, 40 << 20
    else:
        # v5e/v6e: 128 MiB VMEM -> 16 MiB blocks, 64 MiB of buffers + headroom.
        max_block, vmem_limit = 16 << 20, 72 << 20
    if ("v2" in kind) or ("v3" in kind):           # small-VMEM legacy parts, be safe
        max_block, vmem_limit = 2 << 20, 12 << 20
    if vmem_cap is not None:
        max_block = min(max_block, max(1 << 20, (vmem_cap * 6 // 10) // 4))
        vmem_limit = min(vmem_limit, vmem_cap * 3 // 4)

    # Auto-dispatch crossover: pallas_call launch + pipeline warm-up is a few
    # microseconds; below this many elements, XLA's fused elementwise wins.
    small_elems = (1 << 20) if is_v7 else (1 << 18)
    return dict(dual_tc=dual_tc, max_block=max_block,
                vmem_limit=vmem_limit, small_elems=small_elems)


def _choose_rows_tile(rows: int, pack: int, tr_cap: int, dual_tc: bool) -> int:
    """Row-tile size: multiple of `pack` (or the full extent), <= tr_cap."""
    if rows <= pack:
        return rows                                 # full-extent block, always legal
    tr_cap = max(pack, tr_cap // pack * pack)
    if not dual_tc:
        # Single TensorCore: one big block when it fits (splitting = serial loop
        # + extra ~0.35 us step overhead with zero gain); otherwise cap-sized.
        return rows if rows <= tr_cap else tr_cap
    if rows < 2 * pack:
        return rows                                 # cannot form two aligned blocks
    # Dual TensorCore: prefer an even grid with near-equal blocks so both cores
    # stream the same amount of data (odd grids idle one core for a block).
    best = None
    g = 2 * max(1, pl.cdiv(pl.cdiv(rows, tr_cap), 2))   # smallest even grid @ cap
    for _ in range(8):                                   # bounded best-effort search
        tr = _round_up(pl.cdiv(rows, g), pack)
        if tr <= tr_cap:
            steps = pl.cdiv(rows, tr)
            if steps == 1 or steps % 2 == 0:
                return tr
            if best is None:
                best = tr
        g += 2
    return best if best is not None else tr_cap


# ---------------------------------------------------------------------------
# Wrapper
# ---------------------------------------------------------------------------
def _hswish_jnp(x: jax.Array) -> jax.Array:
    return (x * (jnp.clip(x + 3.0, 0.0, 6.0) * (1.0 / 6.0))).astype(x.dtype)


def hswish(x: jax.Array, *, use_pallas: bool | None = None,
           donate: bool = False) -> jax.Array:
    """Elementwise hard-swish. Any shape; returns same shape/dtype.

    donate=True aliases the output onto the input buffer (input_output_aliases);
    use together with jit donation to avoid a second full-size HBM allocation.
    """
    orig_shape = x.shape
    dtype = x.dtype
    total = x.size
    caps = _device_caps()

    if use_pallas is None:
        use_pallas = total >= caps["small_elems"]
    # Ragged sizes (not a multiple of 128 lanes) go through plain XLA: padding
    # + slicing around the kernel would add ~2 extra full-size HBM passes,
    # while the fused XLA elementwise is already at the read+write roofline.
    if (not use_pallas) or total == 0 or (total % _LANES) != 0:
        return _hswish_jnp(x)

    itemsize = jnp.dtype(dtype).itemsize
    pack = _SUBLANE_PACK.get(itemsize, 8)

    # Widest lane-dense slab width dividing the flat size: unmasked, fully
    # lane-dense stores and fewer grid steps.
    width = _LANES
    for cand in (4096, 2048, 1024, 512, 256):
        if total % cand == 0:
            width = cand
            break

    rows = total // width
    x2d = jnp.reshape(x, (rows, width))             # free bitcast, no HBM copy

    tr_cap = max(pack, (caps["max_block"] // (width * itemsize)) // pack * pack)
    tr = _choose_rows_tile(rows, pack, tr_cap, caps["dual_tc"])
    grid = pl.cdiv(rows, tr)                        # partial last block is masked

    out2d = pl.pallas_call(
        _hswish_kernel,
        out_shape=jax.ShapeDtypeStruct((rows, width), dtype),
        grid_spec=pltpu.PrefetchScalarGridSpec(
            num_scalar_prefetch=0,
            grid=(grid,),
            in_specs=[pl.BlockSpec((tr, width), lambda i: (i, 0))],
            out_specs=pl.BlockSpec((tr, width), lambda i: (i, 0)),
        ),
        compiler_params=pltpu.CompilerParams(
            dimension_semantics=("parallel",),
            vmem_limit_bytes=caps["vmem_limit"],
        ),
        input_output_aliases=({0: 0} if donate else {}),
    )(x2d)

    return jnp.reshape(out2d, orig_shape)


# ---------------------------------------------------------------------------
# Reference + tests
# ---------------------------------------------------------------------------
def _hswish_ref_f32(x):
    xf = x.astype(jnp.float32)
    return xf * jnp.clip(xf + 3.0, 0.0, 6.0) / 6.0


if __name__ == "__main__":
    key = jax.random.PRNGKey(0)
    k0, k1, k2, k3, k4 = jax.random.split(key, 5)

    # 1) Primary: NCHW matching the PyTorch module (N=2, C=4, H=W=16); force Pallas.
    x0 = jax.random.normal(k0, (2, 4, 16, 16), dtype=jnp.float32) * 4.0
    y0 = jax.block_until_ready(hswish(x0, use_pallas=True))
    assert y0.shape == x0.shape and y0.dtype == x0.dtype
    assert jnp.allclose(y0.astype(jnp.float32), _hswish_ref_f32(x0), atol=1e-5, rtol=1e-5)

    # 2) Larger f32 case: multi-row slab, generation-aware tiling, no padding.
    x1 = jax.random.normal(k1, (4, 32, 64, 128), dtype=jnp.float32) * 4.0
    y1 = jax.block_until_ready(hswish(x1, use_pallas=True))
    assert jnp.allclose(y1.astype(jnp.float32), _hswish_ref_f32(x1), atol=1e-5, rtol=1e-5)

    # 3) Ragged case (total % 128 != 0): routed to the XLA path by design
    #    (avoids the extra pad/slice HBM passes); still must be correct.
    x2 = jax.random.normal(k2, (2, 3, 17, 19), dtype=jnp.float32) * 4.0
    y2 = jax.block_until_ready(hswish(x2, use_pallas=True))
    assert y2.shape == x2.shape
    assert jnp.allclose(y2.astype(jnp.float32), _hswish_ref_f32(x2), atol=1e-5, rtol=1e-5)

    # 4) bf16 case: native-dtype compute path, (16,128) sublane packing.
    x3 = (jax.random.normal(k3, (2, 8, 32, 128), dtype=jnp.float32) * 4.0).astype(jnp.bfloat16)
    y3 = jax.block_until_ready(hswish(x3, use_pallas=True))
    assert y3.dtype == jnp.bfloat16
    assert jnp.allclose(y3.astype(jnp.float32), _hswish_ref_f32(x3), atol=2e-2, rtol=2e-2)

    # 5) Donated / in-place variant (input_output_aliases); reference computed first.
    x4 = jax.random.normal(k4, (8, 256, 512), dtype=jnp.float32) * 4.0
    ref4 = _hswish_ref_f32(x4)
    hswish_donating = jax.jit(lambda t: hswish(t, use_pallas=True, donate=True),
                              donate_argnums=0)
    y4 = jax.block_until_ready(hswish_donating(x4))
    assert jnp.allclose(y4.astype(jnp.float32), ref4, atol=1e-5, rtol=1e-5)

    # 6) Tiny-input auto-dispatch (routes to the XLA fast path) still matches.
    y5 = jax.block_until_ready(hswish(x0))
    assert jnp.allclose(y5.astype(jnp.float32), _hswish_ref_f32(x0), atol=1e-5, rtol=1e-5)

    print("KERNEL_OK")
</pallas_src>

<mosaic_0001>
module attributes {stable_mosaic.version = 11 : i64} {
  func.func @_hswish_kernel(%arg0: i32, %arg1: memref<1x2048xf32, #tpu.memory_space<vmem>>, %arg2: memref<1x2048xf32, #tpu.memory_space<vmem>>) attributes {dimension_semantics = [#tpu.dimension_semantics<parallel>], iteration_bounds = array<i64: 1>, scalar_prefetch = 0 : i64, scratch_operands = 0 : i64, tpu.core_type = #tpu.core_type<tc>, window_params = [{transform_indices = @transform_0, window_bounds = array<i64: 1, 2048>}, {transform_indices = @transform_1, window_bounds = array<i64: 1, 2048>}]} {
    %c0 = arith.constant 0 : index
    %c0_0 = arith.constant 0 : index
    %0 = vector.load %arg1[%c0, %c0_0] : memref<1x2048xf32, #tpu.memory_space<vmem>>, vector<1x2048xf32>
    %cst = arith.constant 3.000000e+00 : f32
    %1 = vector.broadcast %cst : f32 to vector<1x2048xf32>
    %2 = arith.addf %0, %1 : vector<1x2048xf32>
    %cst_1 = arith.constant 0.000000e+00 : f32
    %cst_2 = arith.constant 6.000000e+00 : f32
    %3 = vector.broadcast %cst_1 : f32 to vector<1x2048xf32>
    %4 = arith.maximumf %3, %2 : vector<1x2048xf32>
    %5 = vector.broadcast %cst_2 : f32 to vector<1x2048xf32>
    %6 = arith.minimumf %5, %4 : vector<1x2048xf32>
    %7 = arith.mulf %0, %6 : vector<1x2048xf32>
    %cst_3 = arith.constant 0.166666672 : f32
    %8 = vector.broadcast %cst_3 : f32 to vector<1x2048xf32>
    %9 = arith.mulf %7, %8 : vector<1x2048xf32>
    %c0_4 = arith.constant 0 : index
    %c0_5 = arith.constant 0 : index
    %10 = vector.load %arg2[%c0_4, %c0_5] : memref<1x2048xf32, #tpu.memory_space<vmem>>, vector<1x2048xf32>
    tpu.vector_store %arg2[%c0_4, %c0_5], %9 {strides = array<i32>} : memref<1x2048xf32, #tpu.memory_space<vmem>>, vector<1x2048xf32>,
    return
  }
  func.func @transform_0(%arg0: i32) -> (i32, i32) {
    %c0_i32 = arith.constant 0 : i32
    %c0_i32_0 = arith.constant 0 : i32
    return %arg0, %c0_i32 : i32, i32
  }
  func.func @transform_1(%arg0: i32) -> (i32, i32) {
    %c0_i32 = arith.constant 0 : i32
    %c0_i32_0 = arith.constant 0 : i32
    return %arg0, %c0_i32 : i32, i32
  }
}

</mosaic_0001>

<llo_original>
// kernel: tpu_custom_call.1
$region0: #{tpu_custom_call.1}
  #allocation0 [shape = 'u32[]', space=smem, size = 0x4, offset = 0x4, fixed_abs, tag = 'smem constant byte address 0x4 - core index']
  #allocation1 [shape = 'u32[72,128]{1,0:T(1,128)}', space=vmem, size = 0x9000, scoped, tag = 'internal scratch']
  %s0 = inlined_call_operand.hbm [shape: f32[1,2048], index: 0, kind: input, shape index: {}]
  %s1 = inlined_call_operand.hbm [shape: f32[1,2048], index: 1, kind: output, shape index: {}]
  %s2 = sld [smem:[#allocation0]]
  $region18: #{tpu_custom_call.1} parent=0
    _
  %s4 = ssub.s32 1, %s2
  %s5 = scalar_select 0, %s4, %s2
  $region1: #{tpu_custom_call.1} parent=0
    #allocation2 [shape = 'u8[8192]{0}', space=vmem, size = 0x2000, scoped, tag = 'input window, operand 0, single buffered']
    #allocation3 [shape = 's32[1]{0}', space=sflag, size = 0x4, scoped, tag = 'scoped memory for tpu_custom_call.1']
    #allocation4 [shape = 's32[1]{0}', space=sflag, size = 0x4, scoped, tag = 'scoped memory for tpu_custom_call.1']
    #allocation5 [shape = 'u8[8192]{0}', space=vmem, size = 0x2000, scoped, tag = 'output window, operand 0, single buffered']
    %6 = vsyncpa [#allocation3], 0
    %7 = vsyncpa [#allocation4], 0
    // Predicated region
    $region2: #{tpu_custom_call.1} parent=1 // pred_check
      _
    $region3: #{tpu_custom_call.1} parent=1 // pred_check_branch
      %9 = sbr.rel (0) target = $region5
    $region4: #{tpu_custom_call.1} parent=1 // pred_region
      %11 = vsyncadd [#allocation3], 0
      %s13 = sshll.u32 %s0, 4
      %s14 = int_to_ptr.hbm [resolvable:$true] %s13
      %s15 = sshll.u32 [#allocation2], 4
      %s16 = int_to_ptr.vmem [resolvable:$true] %s15
      %18 = dma.hbm_to_vmem [thread:$0]  %s14, 256, %s16, [#allocation3]
    $region5: #{tpu_custom_call.1} parent=1 // pred_fallthru
      _
    // Predicated region
    $region6: #{tpu_custom_call.1} parent=1 // pred_check
      _
    $region7: #{tpu_custom_call.1} parent=1 // pred_check_branch
      %20 = sbr.rel (0) target = $region9
    $region8: #{tpu_custom_call.1} parent=1 // pred_region
      %22 = dma.done [#allocation3], 256
    $region9: #{tpu_custom_call.1} parent=1 // pred_fallthru
      _
    %v23 = vld [vmem:[#allocation2] sm:$0xff]
    %v24 = vld [vmem:[#allocation2 + $0x8] sm:$0xff]
    %v25 = vadd.f32 %v23, 3.0
    %v26 = vadd.f32 %v24, 3.0
    %v27 = vmax.f32 %v25, 0.0
    %v28 = vmax.f32 %v26, 0.0
    %v29 = vmin.f32 %v27, 6.0
    %v30 = vmin.f32 %v28, 6.0
    %v31 = vmul.f32 %v23, %v29
    %v32 = vmul.f32 %v24, %v30
    %v33 = vmul.f32 %v31, 0.16666667
    %v34 = vmul.f32 %v32, 0.16666667
    %35 = vst [vmem:[#allocation5] sm:$0xff] %v33
    %36 = vst [vmem:[#allocation5 + $0x8] sm:$0xff] %v34
    // Predicated region
    $region10: #{tpu_custom_call.1} parent=1 // pred_check
      _
    $region11: #{tpu_custom_call.1} parent=1 // pred_check_branch
      %38 = sbr.rel (0) target = $region13
    $region12: #{tpu_custom_call.1} parent=1 // pred_region
      %40 = vsyncadd [#allocation4], 0
      %s42 = sshll.u32 [#allocation5], 4
      %s43 = int_to_ptr.vmem [resolvable:$true] %s42
      %s44 = sshll.u32 %s1, 4
      %s45 = int_to_ptr.hbm [resolvable:$true] %s44
      %47 = dma.vmem_to_hbm [thread:$0]  %s43, 256, %s45, [#allocation4]
    $region13: #{tpu_custom_call.1} parent=1 // pred_fallthru
      _
    // Predicated region
    $region14: #{tpu_custom_call.1} parent=1 // pred_check
      _
    $region15: #{tpu_custom_call.1} parent=1 // pred_check_branch
      %49 = sbr.rel (0) target = $region17
    $region16: #{tpu_custom_call.1} parent=1 // pred_region
      %51 = dma.done [#allocation4], 256
    $region17: #{tpu_custom_call.1} parent=1 // pred_fallthru
      _
    %52 = vsyncpa [#allocation3], 1
    %53 = vsyncpa [#allocation4], 1

</llo_original>
